<compile_context>
chip_gen: v6e
topology: v6e:2x2x1
jax: 0.10.0
libtpu: 0.0.40
codegen_flags: <defaults>
</compile_context>

<pallas_src>
import math
from typing import NamedTuple

import jax
import jax.numpy as jnp
from jax import lax
from jax.experimental import pallas as pl
from jax.experimental.pallas import tpu as pltpu

_SQRT_HALF = 0.7071067811865476
_MIB = 1024 * 1024


def _round_up(a, b):
    return (a + b - 1) // b * b


# --------------------------------------------------------------------------
# Kernels
# --------------------------------------------------------------------------
def ffnn_kernel_inplace(x_ref, w_in_ref, w_out_ref, o_ref):
    """f32-output path: accumulate directly into the resident output block."""
    h_idx = pl.program_id(1)

    @pl.when(h_idx == 0)
    def _init():
        o_ref[...] = jnp.zeros_like(o_ref)

    # First matmul: bf16 inputs (x pre-cast in wrapper), f32 accumulation.
    h = jnp.dot(x_ref[...], w_in_ref[...], preferred_element_type=jnp.float32)
    # nn.GELU() default = exact erf-based GELU, kept in f32 on the VPU/EUP.
    g = 0.5 * h * (1.0 + lax.erf(h * _SQRT_HALF))
    # Second matmul: partial contribution of this H tile, accumulated in place.
    o_ref[...] += jnp.dot(g.astype(jnp.bfloat16), w_out_ref[...],
                          preferred_element_type=jnp.float32)
    # TODO(synk): training-mode dropout (PRNG mask + 1/(1-p) scaling) omitted;
    # inference-mode dropout is the identity, which is what this reproduces.


def ffnn_kernel_scratch(x_ref, w_in_ref, w_out_ref, o_ref, acc_ref):
    """Narrow-output path: f32 scratch accumulator, cast on the last H step."""
    h_idx = pl.program_id(1)

    @pl.when(h_idx == 0)
    def _init():
        acc_ref[...] = jnp.zeros_like(acc_ref)

    h = jnp.dot(x_ref[...], w_in_ref[...], preferred_element_type=jnp.float32)
    g = 0.5 * h * (1.0 + lax.erf(h * _SQRT_HALF))
    acc_ref[...] += jnp.dot(g.astype(jnp.bfloat16), w_out_ref[...],
                            preferred_element_type=jnp.float32)

    @pl.when(h_idx == pl.num_programs(1) - 1)
    def _finalize():
        o_ref[...] = acc_ref[...].astype(o_ref.dtype)


# --------------------------------------------------------------------------
# Weight preparation (hoisted out of the per-call path)
# --------------------------------------------------------------------------
class FFNNWeights(NamedTuple):
    w_in: jax.Array    # (Dp, Hp) bf16, zero-padded
    w_out: jax.Array   # (Hp, Dp) bf16, zero-padded
    D: int
    H: int
    Dp: int
    Hp: int
    th: int


def prepare_ffnn_weights(w_in, w_out, *, th=512):
    """Pad (D->Dp mult of 128, H->Hp mult of th) and cast to bf16, once."""
    D, H = w_in.shape
    assert w_out.shape == (H, D)
    Dp = _round_up(D, 128)
    th = min(th, _round_up(H, 128))
    Hp = _round_up(H, th)
    w_in_p = jnp.pad(w_in, ((0, Dp - D), (0, Hp - H))).astype(jnp.bfloat16)
    w_out_p = jnp.pad(w_out, ((0, Hp - H), (0, Dp - D))).astype(jnp.bfloat16)
    return FFNNWeights(w_in_p, w_out_p, D, H, Dp, Hp, th)


# --------------------------------------------------------------------------
# Generation-aware tile / VMEM-limit selection
# --------------------------------------------------------------------------
def _vmem_capacity_bytes():
    try:
        return int(pltpu.get_tpu_info().vmem_capacity_bytes)
    except Exception:
        return 64 * _MIB  # conservative fallback (v7x-sized)


def _estimate_vmem_bytes(tm, th, Dp, out_bytes, use_scratch):
    x_tile = 2 * tm * Dp * 2          # bf16, double-buffered
    w_in_tile = 2 * Dp * th * 2       # bf16, double-buffered
    w_out_tile = 2 * th * Dp * 2      # bf16, double-buffered
    out_tile = 2 * tm * Dp * out_bytes
    acc = tm * Dp * 4 if use_scratch else 0
    return x_tile + w_in_tile + w_out_tile + out_tile + acc


def _choose_tm(M, tm_target):
    if M <= 128:
        return _round_up(M, 8)
    cands = sorted({c for c in (128, 256, 384, 512, 640, 768, 896, 1024,
                                _round_up(M, 8)) if c <= tm_target})
    # Prefer the largest tile whose M-padding waste stays under ~15%.
    good = [c for c in cands if (_round_up(M, c) - M) / M <= 0.15]
    if good:
        return max(good)
    return min(cands, key=lambda c: _round_up(M, c) - M)


def _select_config(M, Dp, th, out_bytes, use_scratch):
    vmem_cap = _vmem_capacity_bytes()
    if vmem_cap >= 96 * _MIB:
        # v5e / v6e (128 MiB VMEM): roofline wants large M tiles.
        tm_target, vmem_limit = 1024, 100 * _MIB
    else:
        # v7x (64 MiB VMEM per TC): cap the tile budget.
        tm_target, vmem_limit = 512, 56 * _MIB
    tm = _choose_tm(M, tm_target)
    # Shrink tm until the tile budget fits the per-generation VMEM limit.
    # TODO(synk): for very large D (>~8k on v7x) the lane/D axis itself should
    # be tiled; here we only shrink tm.
    while tm > 128 and _estimate_vmem_bytes(tm, th, Dp, out_bytes,
                                            use_scratch) > vmem_limit:
        tm -= 128
    return tm, vmem_limit


# --------------------------------------------------------------------------
# Forward wrapper
# --------------------------------------------------------------------------
def ffnn_forward(x, weights: FFNNWeights, *, out_dtype=None):
    """x: (B, S, D) any float dtype; weights from prepare_ffnn_weights()."""
    B, S, D = x.shape
    assert D == weights.D
    out_dtype = jnp.dtype(x.dtype if out_dtype is None else out_dtype)

    M = B * S
    Dp, Hp, th = weights.Dp, weights.Hp, weights.th
    use_scratch = out_dtype != jnp.dtype(jnp.float32)
    tm, vmem_limit = _select_config(M, Dp, th, out_dtype.itemsize, use_scratch)
    Mp = _round_up(M, tm)

    # Activations: pad and pre-cast to bf16 once, outside the kernel.
    x_p = jnp.pad(x.reshape(M, D), ((0, Mp - M), (0, Dp - D))).astype(jnp.bfloat16)

    grid = (Mp // tm, Hp // th)
    kernel = ffnn_kernel_scratch if use_scratch else ffnn_kernel_inplace
    scratch = [pltpu.VMEM((tm, Dp), jnp.float32)] if use_scratch else []

    out_p = pl.pallas_call(
        kernel,
        out_shape=jax.ShapeDtypeStruct((Mp, Dp), out_dtype),
        grid_spec=pltpu.PrefetchScalarGridSpec(
            num_scalar_prefetch=0,
            grid=grid,
            in_specs=[
                # Activations: move with the M tile only.
                pl.BlockSpec((tm, Dp), lambda i, h: (i, 0)),
                # Weights: index_maps independent of the M index (no re-fetch
                # when only the M tile advances).
                pl.BlockSpec((Dp, th), lambda i, h: (0, h)),
                pl.BlockSpec((th, Dp), lambda i, h: (h, 0)),
            ],
            out_specs=pl.BlockSpec((tm, Dp), lambda i, h: (i, 0)),
            scratch_shapes=scratch,
        ),
        compiler_params=pltpu.CompilerParams(
            dimension_semantics=("parallel", "arbitrary"),
            vmem_limit_bytes=vmem_limit,
        ),
    )(x_p, weights.w_in, weights.w_out)

    return out_p[:M, :D].reshape(B, S, D).astype(out_dtype)


# --------------------------------------------------------------------------
# Pure-JAX reference (mirrors the kernel's bf16-fed / f32-acc numerics)
# --------------------------------------------------------------------------
def reference_forward(x, w_in, w_out):
    B, S, D = x.shape
    x2d = x.reshape(B * S, D)
    h = jnp.dot(x2d.astype(jnp.bfloat16), w_in.astype(jnp.bfloat16),
                preferred_element_type=jnp.float32)
    g = 0.5 * h * (1.0 + lax.erf(h * _SQRT_HALF))
    y = jnp.dot(g.astype(jnp.bfloat16), w_out.astype(jnp.bfloat16),
                preferred_element_type=jnp.float32)
    return y.reshape(B, S, D)


if __name__ == "__main__":
    # Small shapes consistent with the module: n_dims=32, hidden=4*32=128.
    B, S, D = 2, 8, 32
    H = 4 * D

    key = jax.random.PRNGKey(0)
    kx, kw1, kw2 = jax.random.split(key, 3)

    x = jax.random.normal(kx, (B, S, D), dtype=jnp.float32)
    # nn.Linear weights are (out, in); stored pre-transposed as (in, out).
    bound_in = 1.0 / math.sqrt(D)
    bound_out = 1.0 / math.sqrt(H)
    w_in = jax.random.uniform(kw1, (D, H), jnp.float32,
                              minval=-bound_in, maxval=bound_in)
    w_out = jax.random.uniform(kw2, (H, D), jnp.float32,
                               minval=-bound_out, maxval=bound_out)

    # Weight pad+cast hoisted to parameter-setup time (done once).
    weights = prepare_ffnn_weights(w_in, w_out)

    out = ffnn_forward(x, weights)
    out = jax.block_until_ready(out)

    ref = reference_forward(x, w_in, w_out)
    assert out.shape == (B, S, D)
    assert jnp.allclose(out, ref, atol=1e-2, rtol=1e-2), "mismatch vs reference"

    print("KERNEL_OK")
</pallas_src>

<mosaic_0001>
module attributes {stable_mosaic.version = 11 : i64} {
  func.func @ffnn_kernel_inplace(%arg0: i32, %arg1: i32, %arg2: memref<16x128xbf16, #tpu.memory_space<vmem>>, %arg3: memref<128x128xbf16, #tpu.memory_space<vmem>>, %arg4: memref<128x128xbf16, #tpu.memory_space<vmem>>, %arg5: memref<16x128xf32, #tpu.memory_space<vmem>>) attributes {dimension_semantics = [#tpu.dimension_semantics<parallel>, #tpu.dimension_semantics<arbitrary>], iteration_bounds = array<i64: 1, 1>, scalar_prefetch = 0 : i64, scratch_operands = 0 : i64, tpu.core_type = #tpu.core_type<tc>, window_params = [{transform_indices = @transform_0, window_bounds = array<i64: 16, 128>}, {transform_indices = @transform_1, window_bounds = array<i64: 128, 128>}, {transform_indices = @transform_2, window_bounds = array<i64: 128, 128>}, {transform_indices = @transform_3, window_bounds = array<i64: 16, 128>}]} {
    %c0_i32 = arith.constant 0 : i32
    %0 = arith.cmpi eq, %arg1, %c0_i32 : i32
    %1 = arith.extui %0 : i1 to i32
    %c0_i32_0 = arith.constant 0 : i32
    %2 = arith.cmpi ne, %1, %c0_i32_0 : i32
    scf.if %2 {
      %cst_14 = arith.constant 0.000000e+00 : f32
      %20 = vector.broadcast %cst_14 : f32 to vector<16x128xf32>
      %c0_15 = arith.constant 0 : index
      %c0_16 = arith.constant 0 : index
      %21 = vector.load %arg5[%c0_15, %c0_16] : memref<16x128xf32, #tpu.memory_space<vmem>>, vector<16x128xf32>
      tpu.vector_store %arg5[%c0_15, %c0_16], %20 {strides = array<i32>} : memref<16x128xf32, #tpu.memory_space<vmem>>, vector<16x128xf32>,
    } else {
    }
    %c0 = arith.constant 0 : index
    %c0_1 = arith.constant 0 : index
    %3 = vector.load %arg2[%c0, %c0_1] : memref<16x128xbf16, #tpu.memory_space<vmem>>, vector<16x128xbf16>
    %c0_2 = arith.constant 0 : index
    %c0_3 = arith.constant 0 : index
    %4 = vector.load %arg3[%c0_2, %c0_3] : memref<128x128xbf16, #tpu.memory_space<vmem>>, vector<128x128xbf16>
    %cst = arith.constant dense<0.000000e+00> : vector<16x128xf32>
    %5 = tpu.matmul %3, %4, %cst {dimension_numbers = #tpu.dot_dimension_numbers<[1], [0], [0], [1], [0, 0, 1, 1], [], []>} : vector<16x128xbf16>, vector<128x128xbf16>, vector<16x128xf32> -> vector<16x128xf32>
    %cst_4 = arith.constant 5.000000e-01 : f32
    %6 = vector.broadcast %cst_4 : f32 to vector<16x128xf32>
    %7 = arith.mulf %6, %5 : vector<16x128xf32>
    %cst_5 = arith.constant 0.707106769 : f32
    %8 = vector.broadcast %cst_5 : f32 to vector<16x128xf32>
    %9 = arith.mulf %5, %8 : vector<16x128xf32>
    %10 = math.erf %9 : vector<16x128xf32>
    %cst_6 = arith.constant 1.000000e+00 : f32
    %11 = vector.broadcast %cst_6 : f32 to vector<16x128xf32>
    %12 = arith.addf %11, %10 : vector<16x128xf32>
    %13 = arith.mulf %7, %12 : vector<16x128xf32>
    %c0_7 = arith.constant 0 : index
    %c0_8 = arith.constant 0 : index
    %14 = vector.load %arg5[%c0_7, %c0_8] : memref<16x128xf32, #tpu.memory_space<vmem>>, vector<16x128xf32>
    %15 = arith.truncf %13 : vector<16x128xf32> to vector<16x128xbf16>
    %c0_9 = arith.constant 0 : index
    %c0_10 = arith.constant 0 : index
    %16 = vector.load %arg4[%c0_9, %c0_10] : memref<128x128xbf16, #tpu.memory_space<vmem>>, vector<128x128xbf16>
    %cst_11 = arith.constant dense<0.000000e+00> : vector<16x128xf32>
    %17 = tpu.matmul %15, %16, %cst_11 {dimension_numbers = #tpu.dot_dimension_numbers<[1], [0], [0], [1], [0, 0, 1, 1], [], []>} : vector<16x128xbf16>, vector<128x128xbf16>, vector<16x128xf32> -> vector<16x128xf32>
    %18 = arith.addf %14, %17 : vector<16x128xf32>
    %c0_12 = arith.constant 0 : index
    %c0_13 = arith.constant 0 : index
    %19 = vector.load %arg5[%c0_12, %c0_13] : memref<16x128xf32, #tpu.memory_space<vmem>>, vector<16x128xf32>
    tpu.vector_store %arg5[%c0_12, %c0_13], %18 {strides = array<i32>} : memref<16x128xf32, #tpu.memory_space<vmem>>, vector<16x128xf32>,
    return
  }
  func.func @transform_0(%arg0: i32, %arg1: i32) -> (i32, i32) {
    %c0_i32 = arith.constant 0 : i32
    %c0_i32_0 = arith.constant 0 : i32
    return %arg0, %c0_i32 : i32, i32
  }
  func.func @transform_1(%arg0: i32, %arg1: i32) -> (i32, i32) {
    %c0_i32 = arith.constant 0 : i32
    %c0_i32_0 = arith.constant 0 : i32
    return %c0_i32, %arg1 : i32, i32
  }
  func.func @transform_2(%arg0: i32, %arg1: i32) -> (i32, i32) {
    %c0_i32 = arith.constant 0 : i32
    %c0_i32_0 = arith.constant 0 : i32
    return %arg1, %c0_i32 : i32, i32
  }
  func.func @transform_3(%arg0: i32, %arg1: i32) -> (i32, i32) {
    %c0_i32 = arith.constant 0 : i32
    %c0_i32_0 = arith.constant 0 : i32
    return %arg0, %c0_i32 : i32, i32
  }
}

</mosaic_0001>

<llo_original>
// kernel: tpu_custom_call.1
$region0: #{tpu_custom_call.1}
  #allocation0 [shape = 'u32[]', space=smem, size = 0x4, offset = 0x4, fixed_abs, tag = 'smem constant byte address 0x4 - core index']
  #allocation1 [shape = 'u32[144,128]{1,0:T(1,128)}', space=vmem, size = 0x12000, scoped, tag = 'internal scratch']
  %s0 = inlined_call_operand.hbm [shape: bf16[16,128], index: 0, kind: input, shape index: {}]
  %s1 = inlined_call_operand.hbm [shape: bf16[128,128], index: 1, kind: input, shape index: {}]
  %s2 = inlined_call_operand.hbm [shape: bf16[128,128], index: 2, kind: input, shape index: {}]
  %s3 = inlined_call_operand.hbm [shape: f32[16,128], index: 3, kind: output, shape index: {}]
  %s4 = sld [smem:[#allocation0]]
  $region38: #{tpu_custom_call.1} parent=0
    _
  %s6 = ssub.s32 1, %s4
  %s7 = scalar_select 0, %s6, %s4
  $region1: #{tpu_custom_call.1} parent=0
    #allocation2 [shape = 'u8[4096]{0}', space=vmem, size = 0x1000, scoped, tag = 'input window, operand 0, single buffered']
    #allocation3 [shape = 's32[1]{0}', space=sflag, size = 0x4, scoped, tag = 'scoped memory for tpu_custom_call.1']
    #allocation4 [shape = 's32[1]{0}', space=sflag, size = 0x4, scoped, tag = 'scoped memory for tpu_custom_call.1']
    #allocation5 [shape = 'u8[32768]{0}', space=vmem, size = 0x8000, scoped, tag = 'input window, operand 1, single buffered']
    #allocation6 [shape = 's32[1]{0}', space=sflag, size = 0x4, scoped, tag = 'scoped memory for tpu_custom_call.1']
    #allocation7 [shape = 'u8[32768]{0}', space=vmem, size = 0x8000, scoped, tag = 'input window, operand 2, single buffered']
    #allocation8 [shape = 'u8[8192]{0}', space=vmem, size = 0x2000, scoped, tag = 'output window, operand 0, single buffered']
    %8 = vsyncpa [#allocation3], 0
    %9 = vsyncpa [#allocation6], 0
    %10 = vsyncpa [#allocation4], 0
    // Predicated region
    $region2: #{tpu_custom_call.1} parent=1 // pred_check
      _
    $region3: #{tpu_custom_call.1} parent=1 // pred_check_branch
      %12 = sbr.rel (0) target = $region5
    $region4: #{tpu_custom_call.1} parent=1 // pred_region
      %s14 = ssub.s32 128, 128
      %15 = vsyncadd [#allocation3], %s14
      %s16 = sshll.u32 [#allocation2], 4
      %s17 = int_to_ptr.vmem [resolvable:$true] %s16
      %22 = dma.hbm_to_vmem [thread:$0]  %s0, 128, %s17, [#allocation3], 64, 64, 4
    $region5: #{tpu_custom_call.1} parent=1 // pred_fallthru
      _
    // Predicated region
    $region6: #{tpu_custom_call.1} parent=1 // pred_check
      _
    $region7: #{tpu_custom_call.1} parent=1 // pred_check_branch
      %24 = sbr.rel (0) target = $region9
    $region8: #{tpu_custom_call.1} parent=1 // pred_region
      %s26 = ssub.s32 1024, 1024
      %27 = vsyncadd [#allocation6], %s26
      %s28 = sshll.u32 [#allocation5], 4
      %s29 = int_to_ptr.vmem [resolvable:$true] %s28
      %34 = dma.hbm_to_vmem [thread:$0]  %s1, 1024, %s29, [#allocation6], 64, 64, 4
    $region9: #{tpu_custom_call.1} parent=1 // pred_fallthru
      _
    // Predicated region
    $region10: #{tpu_custom_call.1} parent=1 // pred_check
      _
    $region11: #{tpu_custom_call.1} parent=1 // pred_check_branch
      %36 = sbr.rel (0) target = $region13
    $region12: #{tpu_custom_call.1} parent=1 // pred_region
      %s38 = ssub.s32 1024, 1024
      %39 = vsyncadd [#allocation6], %s38
      %s40 = sshll.u32 [#allocation7], 4
      %s41 = int_to_ptr.vmem [resolvable:$true] %s40
      %46 = dma.hbm_to_vmem [thread:$0]  %s2, 1024, %s41, [#allocation6], 64, 64, 4
    $region13: #{tpu_custom_call.1} parent=1 // pred_fallthru
      _
    // Predicated region
    $region14: #{tpu_custom_call.1} parent=1 // pred_check
      _
    $region15: #{tpu_custom_call.1} parent=1 // pred_check_branch
      %48 = sbr.rel (0) target = $region17
    $region16: #{tpu_custom_call.1} parent=1 // pred_region
      %49 = dma.done [#allocation3], 128
    $region17: #{tpu_custom_call.1} parent=1 // pred_fallthru
      _
    // Predicated region
    $region18: #{tpu_custom_call.1} parent=1 // pred_check
      _
    $region19: #{tpu_custom_call.1} parent=1 // pred_check_branch
      %51 = sbr.rel (0) target = $region21
    $region20: #{tpu_custom_call.1} parent=1 // pred_region
      %52 = dma.done [#allocation6], 1024
    $region21: #{tpu_custom_call.1} parent=1 // pred_fallthru
      _
    // Predicated region
    $region22: #{tpu_custom_call.1} parent=1 // pred_check
      _
    $region23: #{tpu_custom_call.1} parent=1 // pred_check_branch
      %54 = sbr.rel (0) target = $region25
    $region24: #{tpu_custom_call.1} parent=1 // pred_region
      %55 = dma.done [#allocation6], 1024
    $region25: #{tpu_custom_call.1} parent=1 // pred_fallthru
      _
    %p57 = scmp.eq.s32.totalorder 0, 0
    // Predicated region
    $region26: #{tpu_custom_call.1} parent=1 // pred_check
      %p58 = pneg %p57
    $region27: #{tpu_custom_call.1} parent=1 // pred_check_branch
      %60 = sbr.rel (%p58) target = $region29
    $region28: #{tpu_custom_call.1} parent=1 // pred_region
      %61 = vst [vmem:[#allocation8] sm:$0xff] 0.0
      %62 = vst [vmem:[#allocation8 + $0x8] sm:$0xff] 0.0
    $region29: #{tpu_custom_call.1} parent=1 // pred_fallthru
      _
    %v63 = vld [vmem:[#allocation2] sm:$0xf]
    %v64 = vld [vmem:[#allocation2 + $0x4] sm:$0xf]
    %v65 = vld [vmem:[#allocation5] sm:$0xf]
    %v66 = vld [vmem:[#allocation5 + $0x4] sm:$0xf]
    %v67 = vld [vmem:[#allocation5 + $0x8] sm:$0xf]
    %v68 = vld [vmem:[#allocation5 + $0xc] sm:$0xf]
    %v69 = vld [vmem:[#allocation5 + $0x10] sm:$0xf]
    %v70 = vld [vmem:[#allocation5 + $0x14] sm:$0xf]
    %v71 = vld [vmem:[#allocation5 + $0x18] sm:$0xf]
    %v72 = vld [vmem:[#allocation5 + $0x1c] sm:$0xf]
    %v73 = vld [vmem:[#allocation5 + $0x20] sm:$0xf]
    %v74 = vld [vmem:[#allocation5 + $0x24] sm:$0xf]
    %v75 = vld [vmem:[#allocation5 + $0x28] sm:$0xf]
    %v76 = vld [vmem:[#allocation5 + $0x2c] sm:$0xf]
    %v77 = vld [vmem:[#allocation5 + $0x30] sm:$0xf]
    %v78 = vld [vmem:[#allocation5 + $0x34] sm:$0xf]
    %v79 = vld [vmem:[#allocation5 + $0x38] sm:$0xf]
    %v80 = vld [vmem:[#allocation5 + $0x3c] sm:$0xf]
    %v83 = vunpack.c.l.b16 %v63
    %v84 = vunpack.c.l.b16 %v64
    %v85 = vpack.c.b16 %v84, %v83
    %v103 = vunpack.c.l.b16 %v65
    %v104 = vunpack.c.l.b16 %v66
    %v105 = vunpack.c.l.b16 %v67
    %v106 = vunpack.c.l.b16 %v68
    %v107 = vunpack.c.l.b16 %v69
    %v108 = vunpack.c.l.b16 %v70
    %v109 = vunpack.c.l.b16 %v71
    %v110 = vunpack.c.l.b16 %v72
    %v111 = vunpack.c.l.b16 %v73
    %v112 = vunpack.c.l.b16 %v74
    %v113 = vunpack.c.l.b16 %v75
    %v114 = vunpack.c.l.b16 %v76
    %v115 = vunpack.c.l.b16 %v77
    %v116 = vunpack.c.l.b16 %v78
    %v117 = vunpack.c.l.b16 %v79
    %v118 = vunpack.c.l.b16 %v80
    %v119 = vpack.c.b16 %v104, %v103
    %v120 = vpack.c.b16 %v106, %v105
    %v121 = vpack.c.b16 %v108, %v107
    %v122 = vpack.c.b16 %v110, %v109
    %v123 = vpack.c.b16 %v112, %v111
    %v124 = vpack.c.b16 %v114, %v113
    %v125 = vpack.c.b16 %v116, %v115
    %v126 = vpack.c.b16 %v118, %v117
    %135 = vmatprep.subr.bf16.mxu0 0
    %136 = vmatpush1.bf16.msra.mxu0 %v126
    %137 = vmatprep.subr.bf16.mxu0 0
    %138 = vmatpush1.bf16.msra.mxu0 %v125
    %139 = vmatprep.subr.bf16.mxu0 0
    %140 = vmatpush1.bf16.msra.mxu0 %v124
    %141 = vmatprep.subr.bf16.mxu0 0
    %142 = vmatpush1.bf16.msra.mxu0 %v123
    %143 = vmatprep.subr.bf16.mxu0 0
    %144 = vmatpush1.bf16.msra.mxu0 %v122
    %145 = vmatprep.subr.bf16.mxu0 0
    %146 = vmatpush1.bf16.msra.mxu0 %v121
    %147 = vmatprep.subr.bf16.mxu0 0
    %148 = vmatpush1.bf16.msra.mxu0 %v120
    %149 = vmatprep.subr.bf16.mxu0 0
    %150 = vmatpush1.bf16.msra.mxu0 %v119
    %151 = vmatprep.subr.bf16.mxu0 0
    %152 = vmatpush2.bf16.msra.mxu0 0
    %153 = vmatprep.subr.bf16.mxu0 0
    %154 = vmatpush2.bf16.msra.mxu0 0
    %155 = vmatprep.subr.bf16.mxu0 0
    %156 = vmatpush2.bf16.msra.mxu0 0
    %157 = vmatprep.subr.bf16.mxu0 0
    %158 = vmatpush2.bf16.msra.mxu0 0
    %159 = vmatprep.subr.bf16.mxu0 0
    %160 = vmatpush2.bf16.msra.mxu0 0
    %161 = vmatprep.subr.bf16.mxu0 0
    %162 = vmatpush2.bf16.msra.mxu0 0
    %163 = vmatprep.subr.bf16.mxu0 0
    %164 = vmatpush2.bf16.msra.mxu0 0
    %165 = vmatprep.subr.bf16.mxu0 0
    %166 = vmatpush2.bf16.msra.mxu0 0
    %167 = vmatprep.mubr.bf16.mxu0 0
    %168 = vmatmul.mubr.bf16.gmra.mxu0 %v85
    %v169 = vpop.f32.mrf.mxu0
    %v170 = vadd.f32 0.0, %v169
    %v171 = vpop.f32.mrf.mxu0
    %v172 = vpop.f32.mrf.mxu0
    %v173 = vadd.f32 0.0, %v172
    %v174 = vpop.f32.mrf.mxu0
    %175 = vdwg.mxu0
    %v176 = vmul.f32 %v170, 0.5
    %v177 = vmul.f32 %v173, 0.5
    %v178 = vmul.f32 %v170, 0.70710677
    %v179 = vmul.f32 %v173, 0.70710677
    %v180 = verf.f32.pop %v178
    %v181 = verf.f32.pop %v179
    %v182 = vadd.f32 %v180, 1.0
    %v183 = vadd.f32 %v181, 1.0
    %v184 = vmul.f32 %v176, %v182
    %v185 = vmul.f32 %v177, %v183
    %v186 = vld [vmem:[#allocation8] sm:$0xff]
    %v187 = vld [vmem:[#allocation8 + $0x8] sm:$0xff]
    %v188 = vpack.c.bf16 %v185, %v184
    %v189 = vld [vmem:[#allocation7] sm:$0xf]
    %v190 = vld [vmem:[#allocation7 + $0x4] sm:$0xf]
    %v191 = vld [vmem:[#allocation7 + $0x8] sm:$0xf]
    %v192 = vld [vmem:[#allocation7 + $0xc] sm:$0xf]
    %v193 = vld [vmem:[#allocation7 + $0x10] sm:$0xf]
    %v194 = vld [vmem:[#allocation7 + $0x14] sm:$0xf]
    %v195 = vld [vmem:[#allocation7 + $0x18] sm:$0xf]
    %v196 = vld [vmem:[#allocation7 + $0x1c] sm:$0xf]
    %v197 = vld [vmem:[#allocation7 + $0x20] sm:$0xf]
    %v198 = vld [vmem:[#allocation7 + $0x24] sm:$0xf]
    %v199 = vld [vmem:[#allocation7 + $0x28] sm:$0xf]
    %v200 = vld [vmem:[#allocation7 + $0x2c] sm:$0xf]
    %v201 = vld [vmem:[#allocation7 + $0x30] sm:$0xf]
    %v202 = vld [vmem:[#allocation7 + $0x34] sm:$0xf]
    %v203 = vld [vmem:[#allocation7 + $0x38] sm:$0xf]
    %v204 = vld [vmem:[#allocation7 + $0x3c] sm:$0xf]
    %v221 = vunpack.c.l.b16 %v189
    %v222 = vunpack.c.l.b16 %v190
    %v223 = vunpack.c.l.b16 %v191
    %v224 = vunpack.c.l.b16 %v192
    %v225 = vunpack.c.l.b16 %v193
    %v226 = vunpack.c.l.b16 %v194
    %v227 = vunpack.c.l.b16 %v195
    %v228 = vunpack.c.l.b16 %v196
    %v229 = vunpack.c.l.b16 %v197
    %v230 = vunpack.c.l.b16 %v198
    %v231 = vunpack.c.l.b16 %v199
    %v232 = vunpack.c.l.b16 %v200
    %v233 = vunpack.c.l.b16 %v201
    %v234 = vunpack.c.l.b16 %v202
    %v235 = vunpack.c.l.b16 %v203
    %v236 = vunpack.c.l.b16 %v204
    %v237 = vpack.c.b16 %v222, %v221
    %v238 = vpack.c.b16 %v224, %v223
    %v239 = vpack.c.b16 %v226, %v225
    %v240 = vpack.c.b16 %v228, %v227
    %v241 = vpack.c.b16 %v230, %v229
    %v242 = vpack.c.b16 %v232, %v231
    %v243 = vpack.c.b16 %v234, %v233
    %v244 = vpack.c.b16 %v236, %v235
    %253 = vmatprep.subr.bf16.mxu0 0
    %254 = vmatpush1.bf16.msra.mxu0 %v244
    %255 = vmatprep.subr.bf16.mxu0 0
    %256 = vmatpush1.bf16.msra.mxu0 %v243
    %257 = vmatprep.subr.bf16.mxu0 0
    %258 = vmatpush1.bf16.msra.mxu0 %v242
    %259 = vmatprep.subr.bf16.mxu0 0
    %260 = vmatpush1.bf16.msra.mxu0 %v241
    %261 = vmatprep.subr.bf16.mxu0 0
    %262 = vmatpush1.bf16.msra.mxu0 %v240
    %263 = vmatprep.subr.bf16.mxu0 0
    %264 = vmatpush1.bf16.msra.mxu0 %v239
    %265 = vmatprep.subr.bf16.mxu0 0
    %266 = vmatpush1.bf16.msra.mxu0 %v238
    %267 = vmatprep.subr.bf16.mxu0 0
    %268 = vmatpush1.bf16.msra.mxu0 %v237
    %269 = vmatprep.subr.bf16.mxu0 0
    %270 = vmatpush2.bf16.msra.mxu0 0
    %271 = vmatprep.subr.bf16.mxu0 0
    %272 = vmatpush2.bf16.msra.mxu0 0
    %273 = vmatprep.subr.bf16.mxu0 0
    %274 = vmatpush2.bf16.msra.mxu0 0
    %275 = vmatprep.subr.bf16.mxu0 0
    %276 = vmatpush2.bf16.msra.mxu0 0
    %277 = vmatprep.subr.bf16.mxu0 0
    %278 = vmatpush2.bf16.msra.mxu0 0
    %279 = vmatprep.subr.bf16.mxu0 0
    %280 = vmatpush2.bf16.msra.mxu0 0
    %281 = vmatprep.subr.bf16.mxu0 0
    %282 = vmatpush2.bf16.msra.mxu0 0
    %283 = vmatprep.subr.bf16.mxu0 0
    %284 = vmatpush2.bf16.msra.mxu0 0
    %285 = vmatprep.mubr.bf16.mxu0 0
    %286 = vmatmul.mubr.bf16.gmra.mxu0 %v188
    %v287 = vpop.f32.mrf.mxu0
    %v288 = vadd.f32 0.0, %v287
    %v289 = vpop.f32.mrf.mxu0
    %v290 = vpop.f32.mrf.mxu0
    %v291 = vadd.f32 0.0, %v290
    %v292 = vpop.f32.mrf.mxu0
    %293 = vdwg.mxu0
    %v294 = vadd.f32 %v186, %v288
    %v295 = vadd.f32 %v187, %v291
    %296 = vst [vmem:[#allocation8] sm:$0xff] %v294
    %297 = vst [vmem:[#allocation8 + $0x8] sm:$0xff] %v295
    // Predicated region
    $region30: #{tpu_custom_call.1} parent=1 // pred_check
      _
    $region31: #{tpu_custom_call.1} parent=1 // pred_check_branch
      %299 = sbr.rel (0) target = $region33
    $region32: #{tpu_custom_call.1} parent=1 // pred_region
      %s301 = ssub.s32 256, 256
      %302 = vsyncadd [#allocation4], %s301
      %s303 = sshll.u32 [#allocation8], 4
      %s304 = int_to_ptr.vmem [resolvable:$true] %s303
      %309 = dma.vmem_to_hbm [thread:$0]  %s304, 256, %s3, [#allocation4], 128, 128, 8
    $region33: #{tpu_custom_call.1} parent=1 // pred_fallthru
      _
    // Predicated region
    $region34: #{tpu_custom_call.1} parent=1 // pred_check
      _
    $region35: #{tpu_custom_call.1} parent=1 // pred_check_branch
      %311 = sbr.rel (0) target = $region37
    $region36: #{tpu_custom_call.1} parent=1 // pred_region
      %312 = dma.done [#allocation4], 256
    $region37: #{tpu_custom_call.1} parent=1 // pred_fallthru
      _
    %313 = vsyncpa [#allocation3], 1
    %314 = vsyncpa [#allocation6], 1
    %315 = vsyncpa [#allocation4], 1

</llo_original>
